<compile_context>
chip_gen: v5e
topology: v5e:2x2
jax: 0.10.0
libtpu: 0.0.40
codegen_flags: <defaults>
</compile_context>

<pallas_src>
import jax
import jax.numpy as jnp
from jax.experimental import pallas as pl
from jax.experimental.pallas import tpu as pltpu

BATCH_SIZE = 5
INPUT_SIZE = 1
H1, H2, H3 = 64, 32, 16
OUTPUT_SIZE = 2

TILE_B = 8            # sublane tile: rows processed per grid step
SLAB_COLS = 128       # lane-dense width for every block

# --- packed parameter slab layout (rows) -------------------------------------
# row 0               : w1  (1, 64) in cols 0:64, zeros elsewhere
# row 1               : b1  (1, 64) in cols 0:64, col 64 = 1.0 (ones lane), rest 0
# rows 2..7           : zero padding (8-row alignment)
# rows 8..135         : W2 block (128,128): rows 0:64 = w2 in cols 0:32,
#                       row 64 = b2 in cols 0:32 and 1.0 at col 32, rest 0
# rows 136..263       : W3 block (128,128): rows 0:32 = w3 in cols 0:16,
#                       row 32 = b3 in cols 0:16 and 1.0 at col 16, rest 0
# rows 264..391       : W4 block (128,128): rows 0:16 = w4 in cols 0:2,
#                       row 16 = b4 in cols 0:2, rest 0
W2_ROW = 8
W3_ROW = W2_ROW + SLAB_COLS      # 136
W4_ROW = W3_ROW + SLAB_COLS      # 264
SLAB_ROWS = W4_ROW + SLAB_COLS   # 392


def mlp_kernel(x_ref, slab_ref, o_ref):
    x = x_ref[...]                                     # (TILE_B, 1) f32

    # Layer 1: K == 1 -> pure VPU broadcast multiply-add (no MXU round-trip).
    w1 = slab_ref[0:1, :]                              # (1, 128)
    b1 = slab_ref[1:2, :]                              # (1, 128), lane H1 == 1.0
    h1 = jnp.maximum(x * w1 + b1, 0.0)                 # (TILE_B, 128); h1[:, 64] == 1

    # Layers 2-4: full-lane (128,128) weight blocks, biases folded via ones lane.
    w2 = slab_ref[W2_ROW:W2_ROW + SLAB_COLS, :]        # (128, 128)
    h2 = jnp.maximum(
        jnp.dot(h1, w2, preferred_element_type=jnp.float32), 0.0)  # h2[:, 32] == 1

    w3 = slab_ref[W3_ROW:W3_ROW + SLAB_COLS, :]        # (128, 128)
    h3 = jnp.maximum(
        jnp.dot(h2, w3, preferred_element_type=jnp.float32), 0.0)  # h3[:, 16] == 1

    w4 = slab_ref[W4_ROW:W4_ROW + SLAB_COLS, :]        # (128, 128)
    # Unmasked full (8, 128) tile store; cols >= 2 are exactly 0.
    o_ref[...] = jnp.dot(h3, w4, preferred_element_type=jnp.float32)


def pack_params(params):
    """Pack all weights/biases into one (SLAB_ROWS, SLAB_COLS) f32 slab."""
    (w1, b1), (w2, b2), (w3, b3), (w4, b4) = params
    slab = jnp.zeros((SLAB_ROWS, SLAB_COLS), jnp.float32)
    # Layer 1 rows (VPU path) + ones lane that feeds bias folding of layer 2.
    slab = slab.at[0, 0:H1].set(w1.reshape(H1))
    slab = slab.at[1, 0:H1].set(b1.reshape(H1))
    slab = slab.at[1, H1].set(1.0)
    # Layer 2 block: weight rows + bias row + propagated ones lane.
    slab = slab.at[W2_ROW:W2_ROW + H1, 0:H2].set(w2)
    slab = slab.at[W2_ROW + H1, 0:H2].set(b2.reshape(H2))
    slab = slab.at[W2_ROW + H1, H2].set(1.0)
    # Layer 3 block.
    slab = slab.at[W3_ROW:W3_ROW + H2, 0:H3].set(w3)
    slab = slab.at[W3_ROW + H2, 0:H3].set(b3.reshape(H3))
    slab = slab.at[W3_ROW + H2, H3].set(1.0)
    # Layer 4 block (no ReLU after, no further bias to fold downstream).
    slab = slab.at[W4_ROW:W4_ROW + H3, 0:OUTPUT_SIZE].set(w4)
    slab = slab.at[W4_ROW + H3, 0:OUTPUT_SIZE].set(b4.reshape(OUTPUT_SIZE))
    return slab


def net_forward(x, slab):
    """x: (N, INPUT_SIZE) f32 (N == BATCH_SIZE for the module spec, but any N
    works and is processed with one kernel launch). Returns (N, OUTPUT_SIZE)."""
    x = x.reshape(-1, INPUT_SIZE)                      # mirror PyTorch reshape
    n = x.shape[0]
    n_pad = pl.cdiv(n, TILE_B) * TILE_B
    if n_pad != n:
        x = jnp.pad(x, ((0, n_pad - n), (0, 0)))       # zero-pad to 8-row tiles

    out_padded = pl.pallas_call(
        mlp_kernel,
        out_shape=jax.ShapeDtypeStruct((n_pad, SLAB_COLS), jnp.float32),
        grid=(n_pad // TILE_B,),
        in_specs=[
            # per-step row tile of inputs
            pl.BlockSpec((TILE_B, INPUT_SIZE), lambda i: (i, 0)),
            # weight slab: same block every step -> DMA'd once, VMEM-resident
            pl.BlockSpec((SLAB_ROWS, SLAB_COLS), lambda i: (0, 0)),
        ],
        out_specs=pl.BlockSpec((TILE_B, SLAB_COLS), lambda i: (i, 0)),
        compiler_params=pltpu.CompilerParams(
            dimension_semantics=("parallel",)),        # shard steps across TCs (v7x)
    )(x, slab)
    return out_padded[:n, :OUTPUT_SIZE]


def init_params(key):
    """nn.Linear-style init; weights stored transposed as (in, out)."""
    dims = [(INPUT_SIZE, H1), (H1, H2), (H2, H3), (H3, OUTPUT_SIZE)]
    params = []
    for fan_in, fan_out in dims:
        key, kw, kb = jax.random.split(key, 3)
        bound = 1.0 / jnp.sqrt(float(fan_in))
        w = jax.random.uniform(kw, (fan_in, fan_out), jnp.float32, -bound, bound)
        b = jax.random.uniform(kb, (1, fan_out), jnp.float32, -bound, bound)
        params.append((w, b))
    return params


def reference_forward(x, params):
    ref = x.reshape(-1, INPUT_SIZE)
    for i, (w, b) in enumerate(params):
        ref = ref @ w + b
        if i < 3:
            ref = jnp.maximum(ref, 0.0)
    return ref


if __name__ == "__main__":
    key = jax.random.PRNGKey(0)
    key, kx = jax.random.split(key)

    x = jax.random.normal(kx, (BATCH_SIZE, INPUT_SIZE), dtype=jnp.float32)
    params = init_params(key)
    slab = pack_params(params)                         # pack once, reuse per call

    # Module-spec case: one (5, 1) batch.
    out = jax.block_until_ready(net_forward(x, slab))
    ref = reference_forward(x, params)
    assert out.shape == (BATCH_SIZE, OUTPUT_SIZE)
    assert jnp.allclose(out, ref, atol=1e-5, rtol=1e-5)

    # Amortized multi-batch case: one launch, grid > 1, slab stays resident.
    key, kx2 = jax.random.split(key)
    xb = jax.random.normal(kx2, (8 * BATCH_SIZE, INPUT_SIZE), dtype=jnp.float32)
    outb = jax.block_until_ready(net_forward(xb, slab))
    refb = reference_forward(xb, params)
    assert outb.shape == (8 * BATCH_SIZE, OUTPUT_SIZE)
    assert jnp.allclose(outb, refb, atol=1e-5, rtol=1e-5)

    print("KERNEL_OK")
</pallas_src>

<mosaic_0001>
module attributes {stable_mosaic.version = 11 : i64} {
  func.func @mlp_kernel(%arg0: i32, %arg1: memref<8x1xf32, #tpu.memory_space<vmem>>, %arg2: memref<392x128xf32, #tpu.memory_space<vmem>>, %arg3: memref<8x128xf32, #tpu.memory_space<vmem>>) attributes {dimension_semantics = [#tpu.dimension_semantics<parallel>], iteration_bounds = array<i64: 1>, scalar_prefetch = 0 : i64, scratch_operands = 0 : i64, tpu.core_type = #tpu.core_type<tc>, window_params = [{transform_indices = @transform_0, window_bounds = array<i64: 8, 1>}, {pipeline_mode = #tpu.pipeline_mode<synchronous>, transform_indices = @transform_1, window_bounds = array<i64: 392, 128>}, {transform_indices = @transform_2, window_bounds = array<i64: 8, 128>}]} {
    %c0 = arith.constant 0 : index
    %c0_0 = arith.constant 0 : index
    %0 = vector.load %arg1[%c0, %c0_0] : memref<8x1xf32, #tpu.memory_space<vmem>>, vector<8x1xf32>
    %c0_1 = arith.constant 0 : index
    %c0_2 = arith.constant 0 : index
    %1 = vector.load %arg2[%c0_1, %c0_2] : memref<392x128xf32, #tpu.memory_space<vmem>>, vector<1x128xf32>
    %c1 = arith.constant 1 : index
    %c0_3 = arith.constant 0 : index
    %2 = vector.load %arg2[%c1, %c0_3] : memref<392x128xf32, #tpu.memory_space<vmem>>, vector<1x128xf32>
    %3 = vector.broadcast %0 : vector<8x1xf32> to vector<8x128xf32>
    %4 = vector.broadcast %1 : vector<1x128xf32> to vector<8x128xf32>
    %5 = arith.mulf %3, %4 : vector<8x128xf32>
    %6 = vector.broadcast %2 : vector<1x128xf32> to vector<8x128xf32>
    %7 = arith.addf %5, %6 : vector<8x128xf32>
    %cst = arith.constant 0.000000e+00 : f32
    %8 = vector.broadcast %cst : f32 to vector<8x128xf32>
    %9 = arith.maximumf %7, %8 : vector<8x128xf32>
    %c8 = arith.constant 8 : index
    %c0_4 = arith.constant 0 : index
    %10 = vector.load %arg2[%c8, %c0_4] : memref<392x128xf32, #tpu.memory_space<vmem>>, vector<128x128xf32>
    %cst_5 = arith.constant dense<0.000000e+00> : vector<8x128xf32>
    %11 = tpu.matmul %9, %10, %cst_5 {dimension_numbers = #tpu.dot_dimension_numbers<[1], [0], [0], [1], [0, 0, 1, 1], [], []>} : vector<8x128xf32>, vector<128x128xf32>, vector<8x128xf32> -> vector<8x128xf32>
    %cst_6 = arith.constant 0.000000e+00 : f32
    %12 = vector.broadcast %cst_6 : f32 to vector<8x128xf32>
    %13 = arith.maximumf %11, %12 : vector<8x128xf32>
    %c136 = arith.constant 136 : index
    %c0_7 = arith.constant 0 : index
    %14 = vector.load %arg2[%c136, %c0_7] : memref<392x128xf32, #tpu.memory_space<vmem>>, vector<128x128xf32>
    %cst_8 = arith.constant dense<0.000000e+00> : vector<8x128xf32>
    %15 = tpu.matmul %13, %14, %cst_8 {dimension_numbers = #tpu.dot_dimension_numbers<[1], [0], [0], [1], [0, 0, 1, 1], [], []>} : vector<8x128xf32>, vector<128x128xf32>, vector<8x128xf32> -> vector<8x128xf32>
    %cst_9 = arith.constant 0.000000e+00 : f32
    %16 = vector.broadcast %cst_9 : f32 to vector<8x128xf32>
    %17 = arith.maximumf %15, %16 : vector<8x128xf32>
    %c264 = arith.constant 264 : index
    %c0_10 = arith.constant 0 : index
    %18 = vector.load %arg2[%c264, %c0_10] : memref<392x128xf32, #tpu.memory_space<vmem>>, vector<128x128xf32>
    %cst_11 = arith.constant dense<0.000000e+00> : vector<8x128xf32>
    %19 = tpu.matmul %17, %18, %cst_11 {dimension_numbers = #tpu.dot_dimension_numbers<[1], [0], [0], [1], [0, 0, 1, 1], [], []>} : vector<8x128xf32>, vector<128x128xf32>, vector<8x128xf32> -> vector<8x128xf32>
    %c0_12 = arith.constant 0 : index
    %c0_13 = arith.constant 0 : index
    %20 = vector.load %arg3[%c0_12, %c0_13] : memref<8x128xf32, #tpu.memory_space<vmem>>, vector<8x128xf32>
    tpu.vector_store %arg3[%c0_12, %c0_13], %19 {strides = array<i32>} : memref<8x128xf32, #tpu.memory_space<vmem>>, vector<8x128xf32>,
    return
  }
  func.func @transform_0(%arg0: i32) -> (i32, i32) {
    %c0_i32 = arith.constant 0 : i32
    %c0_i32_0 = arith.constant 0 : i32
    return %arg0, %c0_i32 : i32, i32
  }
  func.func @transform_1(%arg0: i32) -> (i32, i32) {
    %c0_i32 = arith.constant 0 : i32
    %c0_i32_0 = arith.constant 0 : i32
    %c0_i32_1 = arith.constant 0 : i32
    return %c0_i32, %c0_i32_0 : i32, i32
  }
  func.func @transform_2(%arg0: i32) -> (i32, i32) {
    %c0_i32 = arith.constant 0 : i32
    %c0_i32_0 = arith.constant 0 : i32
    return %arg0, %c0_i32 : i32, i32
  }
}

</mosaic_0001>

<llo_original>
// kernel: tpu_custom_call.1
$region0: #{tpu_custom_call.1}
  #allocation0 [shape = 'u32[]', space=smem, size = 0x4, offset = 0x4, fixed_abs, tag = 'smem constant byte address 0x4 - core index']
  #allocation1 [shape = 'u32[72,128]{1,0:T(1,128)}', space=vmem, size = 0x9000, scoped, tag = 'internal scratch']
  %s0 = inlined_call_operand.vmem [shape: f32[8,1], index: 0, kind: input, shape index: {}]
  %s1 = inlined_call_operand.hbm [shape: f32[392,128], index: 1, kind: input, shape index: {}]
  %s2 = inlined_call_operand.hbm [shape: f32[8,128], index: 2, kind: output, shape index: {}]
  %s3 = sld [smem:[#allocation0]]
  $region22: #{tpu_custom_call.1} parent=0
    _
  %s5 = ssub.s32 1, %s3
  %s6 = scalar_select 0, %s5, %s3
  $region1: #{tpu_custom_call.1} parent=0
    #allocation2 [shape = 'u8[200704]{0}', space=vmem, size = 0x31000, scoped, tag = 'input window, operand 1, single buffered']
    #allocation3 [shape = 's32[1]{0}', space=sflag, size = 0x4, scoped, tag = 'scoped memory for tpu_custom_call.1']
    #allocation4 [shape = 's32[1]{0}', space=sflag, size = 0x4, scoped, tag = 'scoped memory for tpu_custom_call.1']
    #allocation5 [shape = 'u8[4096]{0}', space=vmem, size = 0x1000, scoped, tag = 'output window, operand 0, single buffered']
    %7 = vsyncpa [#allocation3], 0
    %8 = vsyncpa [#allocation4], 0
    // Predicated region
    $region2: #{tpu_custom_call.1} parent=1 // pred_check
      _
    $region3: #{tpu_custom_call.1} parent=1 // pred_check_branch
      %10 = sbr.rel (0) target = $region5
    $region4: #{tpu_custom_call.1} parent=1 // pred_region
      _
    $region5: #{tpu_custom_call.1} parent=1 // pred_fallthru
      _
    // Predicated region
    $region6: #{tpu_custom_call.1} parent=1 // pred_check
      _
    $region7: #{tpu_custom_call.1} parent=1 // pred_check_branch
      %12 = sbr.rel (0) target = $region9
    $region8: #{tpu_custom_call.1} parent=1 // pred_region
      %14 = vsyncadd [#allocation3], 0
      %s15 = sshll.u32 %s1, 4
      %s16 = int_to_ptr.hbm [resolvable:$true] %s15
      %s17 = sshll.u32 [#allocation2], 4
      %s18 = int_to_ptr.vmem [resolvable:$true] %s17
      %23 = dma.hbm_to_vmem [thread:$0]  %s16, 6272, %s18, [#allocation3], 128, 128, 8
    $region9: #{tpu_custom_call.1} parent=1 // pred_fallthru
      _
    // Predicated region
    $region10: #{tpu_custom_call.1} parent=1 // pred_check
      _
    $region11: #{tpu_custom_call.1} parent=1 // pred_check_branch
      %25 = sbr.rel (0) target = $region13
    $region12: #{tpu_custom_call.1} parent=1 // pred_region
      %27 = dma.done [#allocation3], 6272
    $region13: #{tpu_custom_call.1} parent=1 // pred_fallthru
      _
    %v28 = vld [vmem:[%s0] sm:$0xff]
    %v29 = vld [vmem:[#allocation2] sm:$0x1]
    %v30 = vld [vmem:[#allocation2 + $0x1] sm:$0x1]
    %32 = vset.pattern.permute.xlu0 0
    %33 = vperm.xlu0 %32, %v28
    %v34 = vpop.permute.xlu0 %33
    %v36 = vperm.slane %v29, 0
    %v37 = vmul.f32 %v34, %v36
    %v38 = vperm.slane %v30, 0
    %v39 = vadd.f32 %v37, %v38
    %v40 = vmax.f32 %v39, 0.0
    %v41 = vld [vmem:[#allocation2 + $0x8] sm:$0xff]
    %v42 = vld [vmem:[#allocation2 + $0x10] sm:$0xff]
    %v43 = vld [vmem:[#allocation2 + $0x18] sm:$0xff]
    %v44 = vld [vmem:[#allocation2 + $0x20] sm:$0xff]
    %v45 = vld [vmem:[#allocation2 + $0x28] sm:$0xff]
    %v46 = vld [vmem:[#allocation2 + $0x30] sm:$0xff]
    %v47 = vld [vmem:[#allocation2 + $0x38] sm:$0xff]
    %v48 = vld [vmem:[#allocation2 + $0x40] sm:$0xff]
    %v49 = vld [vmem:[#allocation2 + $0x48] sm:$0xff]
    %v50 = vld [vmem:[#allocation2 + $0x50] sm:$0xff]
    %v51 = vld [vmem:[#allocation2 + $0x58] sm:$0xff]
    %v52 = vld [vmem:[#allocation2 + $0x60] sm:$0xff]
    %v53 = vld [vmem:[#allocation2 + $0x68] sm:$0xff]
    %v54 = vld [vmem:[#allocation2 + $0x70] sm:$0xff]
    %v55 = vld [vmem:[#allocation2 + $0x78] sm:$0xff]
    %v56 = vld [vmem:[#allocation2 + $0x80] sm:$0xff]
    %57 = vmatpush.msra.mxu0 %v56
    %58 = vmatpush.msra.mxu0 %v55
    %59 = vmatpush.msra.mxu0 %v54
    %60 = vmatpush.msra.mxu0 %v53
    %61 = vmatpush.msra.mxu0 %v52
    %62 = vmatpush.msra.mxu0 %v51
    %63 = vmatpush.msra.mxu0 %v50
    %64 = vmatpush.msra.mxu0 %v49
    %65 = vmatpush.msra.mxu0 %v48
    %66 = vmatpush.msra.mxu0 %v47
    %67 = vmatpush.msra.mxu0 %v46
    %68 = vmatpush.msra.mxu0 %v45
    %69 = vmatpush.msra.mxu0 %v44
    %70 = vmatpush.msra.mxu0 %v43
    %71 = vmatpush.msra.mxu0 %v42
    %72 = vmatpush.msra.mxu0 %v41
    %73 = vmatmul.f32.gmra.mxu0 %v40
    %v74 = vpop.f32.mrf.mxu0
    %v75 = vadd.f32 0.0, %v74
    %76 = vdwg.mxu0
    %v77 = vmax.f32 %v75, 0.0
    %v78 = vld [vmem:[#allocation2 + $0x88] sm:$0xff]
    %v79 = vld [vmem:[#allocation2 + $0x90] sm:$0xff]
    %v80 = vld [vmem:[#allocation2 + $0x98] sm:$0xff]
    %v81 = vld [vmem:[#allocation2 + $0xa0] sm:$0xff]
    %v82 = vld [vmem:[#allocation2 + $0xa8] sm:$0xff]
    %v83 = vld [vmem:[#allocation2 + $0xb0] sm:$0xff]
    %v84 = vld [vmem:[#allocation2 + $0xb8] sm:$0xff]
    %v85 = vld [vmem:[#allocation2 + $0xc0] sm:$0xff]
    %v86 = vld [vmem:[#allocation2 + $0xc8] sm:$0xff]
    %v87 = vld [vmem:[#allocation2 + $0xd0] sm:$0xff]
    %v88 = vld [vmem:[#allocation2 + $0xd8] sm:$0xff]
    %v89 = vld [vmem:[#allocation2 + $0xe0] sm:$0xff]
    %v90 = vld [vmem:[#allocation2 + $0xe8] sm:$0xff]
    %v91 = vld [vmem:[#allocation2 + $0xf0] sm:$0xff]
    %v92 = vld [vmem:[#allocation2 + $0xf8] sm:$0xff]
    %v93 = vld [vmem:[#allocation2 + $0x100] sm:$0xff]
    %94 = vmatpush.msra.mxu0 %v93
    %95 = vmatpush.msra.mxu0 %v92
    %96 = vmatpush.msra.mxu0 %v91
    %97 = vmatpush.msra.mxu0 %v90
    %98 = vmatpush.msra.mxu0 %v89
    %99 = vmatpush.msra.mxu0 %v88
    %100 = vmatpush.msra.mxu0 %v87
    %101 = vmatpush.msra.mxu0 %v86
    %102 = vmatpush.msra.mxu0 %v85
    %103 = vmatpush.msra.mxu0 %v84
    %104 = vmatpush.msra.mxu0 %v83
    %105 = vmatpush.msra.mxu0 %v82
    %106 = vmatpush.msra.mxu0 %v81
    %107 = vmatpush.msra.mxu0 %v80
    %108 = vmatpush.msra.mxu0 %v79
    %109 = vmatpush.msra.mxu0 %v78
    %110 = vmatmul.f32.gmra.mxu0 %v77
    %v111 = vpop.f32.mrf.mxu0
    %v112 = vadd.f32 0.0, %v111
    %113 = vdwg.mxu0
    %v114 = vmax.f32 %v112, 0.0
    %v115 = vld [vmem:[#allocation2 + $0x108] sm:$0xff]
    %v116 = vld [vmem:[#allocation2 + $0x110] sm:$0xff]
    %v117 = vld [vmem:[#allocation2 + $0x118] sm:$0xff]
    %v118 = vld [vmem:[#allocation2 + $0x120] sm:$0xff]
    %v119 = vld [vmem:[#allocation2 + $0x128] sm:$0xff]
    %v120 = vld [vmem:[#allocation2 + $0x130] sm:$0xff]
    %v121 = vld [vmem:[#allocation2 + $0x138] sm:$0xff]
    %v122 = vld [vmem:[#allocation2 + $0x140] sm:$0xff]
    %v123 = vld [vmem:[#allocation2 + $0x148] sm:$0xff]
    %v124 = vld [vmem:[#allocation2 + $0x150] sm:$0xff]
    %v125 = vld [vmem:[#allocation2 + $0x158] sm:$0xff]
    %v126 = vld [vmem:[#allocation2 + $0x160] sm:$0xff]
    %v127 = vld [vmem:[#allocation2 + $0x168] sm:$0xff]
    %v128 = vld [vmem:[#allocation2 + $0x170] sm:$0xff]
    %v129 = vld [vmem:[#allocation2 + $0x178] sm:$0xff]
    %v130 = vld [vmem:[#allocation2 + $0x180] sm:$0xff]
    %131 = vmatpush.msra.mxu0 %v130
    %132 = vmatpush.msra.mxu0 %v129
    %133 = vmatpush.msra.mxu0 %v128
    %134 = vmatpush.msra.mxu0 %v127
    %135 = vmatpush.msra.mxu0 %v126
    %136 = vmatpush.msra.mxu0 %v125
    %137 = vmatpush.msra.mxu0 %v124
    %138 = vmatpush.msra.mxu0 %v123
    %139 = vmatpush.msra.mxu0 %v122
    %140 = vmatpush.msra.mxu0 %v121
    %141 = vmatpush.msra.mxu0 %v120
    %142 = vmatpush.msra.mxu0 %v119
    %143 = vmatpush.msra.mxu0 %v118
    %144 = vmatpush.msra.mxu0 %v117
    %145 = vmatpush.msra.mxu0 %v116
    %146 = vmatpush.msra.mxu0 %v115
    %147 = vmatmul.f32.gmra.mxu0 %v114
    %v148 = vpop.f32.mrf.mxu0
    %v149 = vadd.f32 0.0, %v148
    %150 = vdwg.mxu0
    %151 = vst [vmem:[#allocation5] sm:$0xff] %v149
    // Predicated region
    $region14: #{tpu_custom_call.1} parent=1 // pred_check
      _
    $region15: #{tpu_custom_call.1} parent=1 // pred_check_branch
      %153 = sbr.rel (0) target = $region17
    $region16: #{tpu_custom_call.1} parent=1 // pred_region
      %155 = vsyncadd [#allocation4], 0
      %s157 = sshll.u32 [#allocation5], 4
      %s158 = int_to_ptr.vmem [resolvable:$true] %s157
      %s159 = sshll.u32 %s2, 4
      %s160 = int_to_ptr.hbm [resolvable:$true] %s159
      %162 = dma.vmem_to_hbm [thread:$0]  %s158, 128, %s160, [#allocation4]
    $region17: #{tpu_custom_call.1} parent=1 // pred_fallthru
      _
    // Predicated region
    $region18: #{tpu_custom_call.1} parent=1 // pred_check
      _
    $region19: #{tpu_custom_call.1} parent=1 // pred_check_branch
      %164 = sbr.rel (0) target = $region21
    $region20: #{tpu_custom_call.1} parent=1 // pred_region
      %166 = dma.done [#allocation4], 128
    $region21: #{tpu_custom_call.1} parent=1 // pred_fallthru
      _
    %167 = vsyncpa [#allocation3], 1
    %168 = vsyncpa [#allocation4], 1

</llo_original>
